<compile_context>
chip_gen: v5e
topology: v5e:2x2
jax: 0.10.0
libtpu: 0.0.40
codegen_flags: <defaults>
</compile_context>

<pallas_src>
import jax
import jax.numpy as jnp
import numpy as np
from jax.experimental import pallas as pl
from jax.experimental.pallas import tpu as pltpu

T = 24          # fixed by the module: X is (n_agents, 24, 24)
F = T * T       # 576: one agent = one lane-dense 576-wide row


def _fused_weight():
    """(F, F) bf16 block-diagonal weight fusing cumsum(axis=2) + tril(-1).

    Input row index   = t*T + k   (time-row t, column slot k of X)
    Output col index  = t'*T + j  (time-row t', column slot j of the result)
    W[t*T + k, t'*T + j] = 1  iff  t == t'  and  k <= j  and  t' > j
    so  (X_flat @ W)[a, t*T + j] = sum_{k<=j} X[a, t, k]  gated by (t > j).
    Values are exactly 0/1 -> bfloat16 is lossless.
    """
    idx = np.arange(F)
    t_r, k = idx // T, idx % T          # input (row) decomposition
    t_c, j = idx // T, idx % T          # output (column) decomposition
    w = ((t_r[:, None] == t_c[None, :])
         & (k[:, None] <= j[None, :])
         & (t_c[None, :] > j[None, :]))
    return jnp.asarray(w, dtype=jnp.bfloat16)


def _round_up(x, m):
    return (x + m - 1) // m * m


def _min_sublane(dtype):
    """Minimum legal sublane multiple for a tiled block of this dtype."""
    itemsize = jnp.dtype(dtype).itemsize
    if itemsize >= 4:
        return 8
    if itemsize == 2:
        return 16
    return 32


def gru_module_3_kernel(x_ref, w_ref, o_ref):
    # x_ref: (A_BLK, 576)   w_ref: (576, 576) bf16 constant (VMEM-resident)
    x = x_ref[...]
    w = w_ref[...].astype(x.dtype)   # lossless 0/1 widen; no-op for bf16 inputs
    o_ref[...] = jnp.dot(x, w, preferred_element_type=jnp.float32).astype(o_ref.dtype)


def gru_module_3(X, *, a_blk_max=1024, target_steps=4):
    """X: (n_agents, 24, 24) -> (n_agents, 24, 24) = tril(cumsum(X, -1), -1)."""
    n_agents = X.shape[0]
    assert X.shape[1] == T and X.shape[2] == T
    dtype = X.dtype

    # Lane-dense view: last dim becomes 576 (multiple of >=128 lanes of work),
    # free row-major reshape.  No padding pass: Pallas masks the partial block.
    x_flat = X.reshape(n_agents, F)
    w = _fused_weight()

    # Agent-block size: aim for >= target_steps grid steps (pipelining + v7x
    # megacore), round to the dtype's sublane multiple, cap for VMEM.
    sub = _min_sublane(dtype)
    a_blk_cap = max(sub, (int(a_blk_max) // sub) * sub)
    a_blk = _round_up(max(pl.cdiv(n_agents, target_steps), 1), sub)
    a_blk = min(a_blk, a_blk_cap, _round_up(n_agents, sub))
    a_blk = max(a_blk, sub)
    grid = pl.cdiv(n_agents, a_blk)

    out = pl.pallas_call(
        gru_module_3_kernel,
        out_shape=jax.ShapeDtypeStruct((n_agents, F), dtype),
        grid_spec=pltpu.PrefetchScalarGridSpec(
            num_scalar_prefetch=0,
            grid=(grid,),
            in_specs=[
                pl.BlockSpec((a_blk, F), lambda a: (a, 0)),
                pl.BlockSpec((F, F), lambda a: (0, 0)),   # constant -> resident
            ],
            out_specs=pl.BlockSpec((a_blk, F), lambda a: (a, 0)),
        ),
        compiler_params=pltpu.CompilerParams(
            dimension_semantics=("parallel",),
            vmem_limit_bytes=32 * 1024 * 1024,  # safe on v5e / v6e / v7x
        ),
    )(x_flat, w)

    return out.reshape(n_agents, T, T)


if __name__ == "__main__":
    key = jax.random.PRNGKey(0)
    k0, k1, k2 = jax.random.split(key, 3)

    def ref_fn(X):
        c = jnp.cumsum(X, axis=2)
        mask = jnp.arange(T)[:, None] > jnp.arange(T)[None, :]
        return jnp.where(mask, c, 0.0).astype(X.dtype)

    # 1) Tiny batch: single partial block (2 rows inside an 8-row block).
    X_small = jax.random.uniform(k0, (2, T, T), dtype=jnp.float32)
    out_small = jax.block_until_ready(gru_module_3(X_small))
    assert out_small.shape == (2, T, T)
    assert jnp.allclose(out_small, ref_fn(X_small), atol=1e-5, rtol=1e-5), \
        "mismatch vs reference (small batch)"

    # 2) Ragged batch, default tiling: multi-step grid with a masked tail block.
    X_mid = jax.random.uniform(k1, (37, T, T), dtype=jnp.float32)
    out_mid = jax.block_until_ready(gru_module_3(X_mid))
    assert out_mid.shape == (37, T, T)
    assert jnp.allclose(out_mid, ref_fn(X_mid), atol=1e-5, rtol=1e-5), \
        "mismatch vs reference (ragged batch, default tiling)"

    # 3) Small block cap: exercises >=4 pipelined grid steps + tail masking.
    X_tail = jax.random.uniform(k2, (70, T, T), dtype=jnp.float32)
    out_tail = jax.block_until_ready(gru_module_3(X_tail, a_blk_max=16))
    assert out_tail.shape == (70, T, T)
    assert jnp.allclose(out_tail, ref_fn(X_tail), atol=1e-5, rtol=1e-5), \
        "mismatch vs reference (capped block size)"

    print("KERNEL_OK")
</pallas_src>

<mosaic_0001>
module attributes {stable_mosaic.version = 11 : i64} {
  func.func @gru_module_3_kernel(%arg0: i32, %arg1: memref<8x576xf32, #tpu.memory_space<vmem>>, %arg2: memref<576x576xbf16, #tpu.memory_space<vmem>>, %arg3: memref<8x576xf32, #tpu.memory_space<vmem>>) attributes {dimension_semantics = [#tpu.dimension_semantics<parallel>], iteration_bounds = array<i64: 1>, scalar_prefetch = 0 : i64, scratch_operands = 0 : i64, tpu.core_type = #tpu.core_type<tc>, window_params = [{transform_indices = @transform_0, window_bounds = array<i64: 8, 576>}, {pipeline_mode = #tpu.pipeline_mode<synchronous>, transform_indices = @transform_1, window_bounds = array<i64: 576, 576>}, {transform_indices = @transform_2, window_bounds = array<i64: 8, 576>}]} {
    %c0 = arith.constant 0 : index
    %c0_0 = arith.constant 0 : index
    %0 = vector.load %arg1[%c0, %c0_0] : memref<8x576xf32, #tpu.memory_space<vmem>>, vector<8x576xf32>
    %c0_1 = arith.constant 0 : index
    %c0_2 = arith.constant 0 : index
    %1 = vector.load %arg2[%c0_1, %c0_2] : memref<576x576xbf16, #tpu.memory_space<vmem>>, vector<576x576xbf16>
    %2 = arith.extf %1 : vector<576x576xbf16> to vector<576x576xf32>
    %cst = arith.constant dense<0.000000e+00> : vector<8x576xf32>
    %3 = tpu.matmul %0, %2, %cst {dimension_numbers = #tpu.dot_dimension_numbers<[1], [0], [0], [1], [0, 0, 1, 1], [], []>} : vector<8x576xf32>, vector<576x576xf32>, vector<8x576xf32> -> vector<8x576xf32>
    %c0_3 = arith.constant 0 : index
    %c0_4 = arith.constant 0 : index
    %4 = vector.load %arg3[%c0_3, %c0_4] : memref<8x576xf32, #tpu.memory_space<vmem>>, vector<8x576xf32>
    tpu.vector_store %arg3[%c0_3, %c0_4], %3 {strides = array<i32>} : memref<8x576xf32, #tpu.memory_space<vmem>>, vector<8x576xf32>,
    return
  }
  func.func @transform_0(%arg0: i32) -> (i32, i32) {
    %c0_i32 = arith.constant 0 : i32
    %c0_i32_0 = arith.constant 0 : i32
    return %arg0, %c0_i32 : i32, i32
  }
  func.func @transform_1(%arg0: i32) -> (i32, i32) {
    %c0_i32 = arith.constant 0 : i32
    %c0_i32_0 = arith.constant 0 : i32
    %c0_i32_1 = arith.constant 0 : i32
    return %c0_i32, %c0_i32_0 : i32, i32
  }
  func.func @transform_2(%arg0: i32) -> (i32, i32) {
    %c0_i32 = arith.constant 0 : i32
    %c0_i32_0 = arith.constant 0 : i32
    return %arg0, %c0_i32 : i32, i32
  }
}

</mosaic_0001>

<llo_original>
// kernel: tpu_custom_call.1
$region0: #{tpu_custom_call.1}
  #allocation0 [shape = 'u32[]', space=smem, size = 0x4, offset = 0x4, fixed_abs, tag = 'smem constant byte address 0x4 - core index']
  #allocation1 [shape = 'u32[72,128]{1,0:T(1,128)}', space=vmem, size = 0x9000, scoped, tag = 'internal scratch']
  %s0 = inlined_call_operand.hbm [shape: f32[2,576], index: 0, kind: input, shape index: {}]
  %s1 = inlined_call_operand.hbm [shape: bf16[576,576], index: 1, kind: input, shape index: {}]
  %s2 = inlined_call_operand.hbm [shape: f32[2,576], index: 2, kind: output, shape index: {}]
  %s3 = sld [smem:[#allocation0]]
  $region26: #{tpu_custom_call.1} parent=0
    _
  %s5 = ssub.s32 1, %s3
  %s6 = scalar_select 0, %s5, %s3
  $region1: #{tpu_custom_call.1} parent=0
    #allocation2 [shape = 'u8[20480]{0}', space=vmem, size = 0x5000, scoped, tag = 'input window, operand 0, single buffered']
    #allocation3 [shape = 's32[1]{0}', space=sflag, size = 0x4, scoped, tag = 'scoped memory for tpu_custom_call.1']
    #allocation4 [shape = 's32[1]{0}', space=sflag, size = 0x4, scoped, tag = 'scoped memory for tpu_custom_call.1']
    #allocation5 [shape = 'u8[737280]{0}', space=vmem, size = 0xb4000, scoped, tag = 'input window, operand 1, single buffered']
    #allocation6 [shape = 's32[1]{0}', space=sflag, size = 0x4, scoped, tag = 'scoped memory for tpu_custom_call.1']
    #allocation7 [shape = 'u8[20480]{0}', space=vmem, size = 0x5000, scoped, tag = 'output window, operand 0, single buffered']
    %7 = vsyncpa [#allocation3], 0
    %8 = vsyncpa [#allocation6], 0
    %9 = vsyncpa [#allocation4], 0
    // Predicated region
    $region2: #{tpu_custom_call.1} parent=1 // pred_check
      _
    $region3: #{tpu_custom_call.1} parent=1 // pred_check_branch
      %11 = sbr.rel (0) target = $region5
    $region4: #{tpu_custom_call.1} parent=1 // pred_region
      %13 = vsyncadd [#allocation3], 480
      %s14 = sshll.u32 %s0, 4
      %s15 = int_to_ptr.hbm [resolvable:$true] %s14
      %s16 = sshll.u32 [#allocation2], 4
      %s17 = int_to_ptr.vmem [resolvable:$true] %s16
      %22 = dma.hbm_to_vmem [thread:$0]  %s15, 160, %s17, [#allocation3], 160, 160, 10
    $region5: #{tpu_custom_call.1} parent=1 // pred_fallthru
      _
    // Predicated region
    $region6: #{tpu_custom_call.1} parent=1 // pred_check
      _
    $region7: #{tpu_custom_call.1} parent=1 // pred_check_branch
      %24 = sbr.rel (0) target = $region9
    $region8: #{tpu_custom_call.1} parent=1 // pred_region
      %26 = vsyncadd [#allocation6], 0
      %s27 = sshll.u32 %s1, 4
      %s28 = int_to_ptr.hbm [resolvable:$true] %s27
      %s29 = sshll.u32 [#allocation5], 4
      %s30 = int_to_ptr.vmem [resolvable:$true] %s29
      %35 = dma.hbm_to_vmem [thread:$0]  %s28, 23040, %s30, [#allocation6], 320, 320, 20
    $region9: #{tpu_custom_call.1} parent=1 // pred_fallthru
      _
    // Predicated region
    $region10: #{tpu_custom_call.1} parent=1 // pred_check
      _
    $region11: #{tpu_custom_call.1} parent=1 // pred_check_branch
      %37 = sbr.rel (0) target = $region13
    $region12: #{tpu_custom_call.1} parent=1 // pred_region
      %39 = dma.done [#allocation3], 640
    $region13: #{tpu_custom_call.1} parent=1 // pred_fallthru
      _
    // Predicated region
    $region14: #{tpu_custom_call.1} parent=1 // pred_check
      _
    $region15: #{tpu_custom_call.1} parent=1 // pred_check_branch
      %41 = sbr.rel (0) target = $region17
    $region16: #{tpu_custom_call.1} parent=1 // pred_region
      %43 = dma.done [#allocation6], 23040
    $region17: #{tpu_custom_call.1} parent=1 // pred_fallthru
      _
    %v44 = vld [vmem:[#allocation2] sm:$0xff]
    %v45 = vld [vmem:[#allocation2 + $0x8] sm:$0x3]
    %v46 = vld [vmem:[#allocation2 + $0xa] sm:$0xff]
    %v47 = vld [vmem:[#allocation2 + $0x12] sm:$0x3]
    %v48 = vld [vmem:[#allocation2 + $0x14] sm:$0xff]
    %v49 = vld [vmem:[#allocation2 + $0x1c] sm:$0x3]
    %v50 = vld [vmem:[#allocation2 + $0x1e] sm:$0xff]
    %v51 = vld [vmem:[#allocation2 + $0x26] sm:$0x3]
    %v52 = vld [vmem:[#allocation5] sm:$0xff]
    %v53 = vld [vmem:[#allocation5 + $0x8] sm:$0xff]
    %v54 = vld [vmem:[#allocation5 + $0x10] sm:$0xf]
    %v55 = vld [vmem:[#allocation5 + $0x14] sm:$0xff]
    %v56 = vld [vmem:[#allocation5 + $0x1c] sm:$0xff]
    %v57 = vld [vmem:[#allocation5 + $0x24] sm:$0xf]
    %v58 = vld [vmem:[#allocation5 + $0x28] sm:$0xff]
    %v59 = vld [vmem:[#allocation5 + $0x30] sm:$0xff]
    %v60 = vld [vmem:[#allocation5 + $0x38] sm:$0xf]
    %v61 = vld [vmem:[#allocation5 + $0x3c] sm:$0xff]
    %v62 = vld [vmem:[#allocation5 + $0x44] sm:$0xff]
    %v63 = vld [vmem:[#allocation5 + $0x4c] sm:$0xf]
    %v64 = vld [vmem:[#allocation5 + $0x50] sm:$0xff]
    %v65 = vld [vmem:[#allocation5 + $0x58] sm:$0xff]
    %v66 = vld [vmem:[#allocation5 + $0x60] sm:$0xf]
    %v67 = vld [vmem:[#allocation5 + $0x64] sm:$0xff]
    %v68 = vld [vmem:[#allocation5 + $0x6c] sm:$0xff]
    %v69 = vld [vmem:[#allocation5 + $0x74] sm:$0xf]
    %v70 = vld [vmem:[#allocation5 + $0x78] sm:$0xff]
    %v71 = vld [vmem:[#allocation5 + $0x80] sm:$0xff]
    %v72 = vld [vmem:[#allocation5 + $0x88] sm:$0xf]
    %v73 = vld [vmem:[#allocation5 + $0x8c] sm:$0xff]
    %v74 = vld [vmem:[#allocation5 + $0x94] sm:$0xff]
    %v75 = vld [vmem:[#allocation5 + $0x9c] sm:$0xf]
    %v76 = vld [vmem:[#allocation5 + $0xa0] sm:$0xff]
    %v77 = vld [vmem:[#allocation5 + $0xa8] sm:$0xff]
    %v78 = vld [vmem:[#allocation5 + $0xb0] sm:$0xf]
    %v79 = vld [vmem:[#allocation5 + $0xb4] sm:$0xff]
    %v80 = vld [vmem:[#allocation5 + $0xbc] sm:$0xff]
    %v81 = vld [vmem:[#allocation5 + $0xc4] sm:$0xf]
    %v82 = vld [vmem:[#allocation5 + $0xc8] sm:$0xff]
    %v83 = vld [vmem:[#allocation5 + $0xd0] sm:$0xff]
    %v84 = vld [vmem:[#allocation5 + $0xd8] sm:$0xf]
    %v85 = vld [vmem:[#allocation5 + $0xdc] sm:$0xff]
    %v86 = vld [vmem:[#allocation5 + $0xe4] sm:$0xff]
    %v87 = vld [vmem:[#allocation5 + $0xec] sm:$0xf]
    %v88 = vld [vmem:[#allocation5 + $0xf0] sm:$0xff]
    %v89 = vld [vmem:[#allocation5 + $0xf8] sm:$0xff]
    %v90 = vld [vmem:[#allocation5 + $0x100] sm:$0xf]
    %v91 = vld [vmem:[#allocation5 + $0x104] sm:$0xff]
    %v92 = vld [vmem:[#allocation5 + $0x10c] sm:$0xff]
    %v93 = vld [vmem:[#allocation5 + $0x114] sm:$0xf]
    %v94 = vld [vmem:[#allocation5 + $0x118] sm:$0xff]
    %v95 = vld [vmem:[#allocation5 + $0x120] sm:$0xff]
    %v96 = vld [vmem:[#allocation5 + $0x128] sm:$0xf]
    %v97 = vld [vmem:[#allocation5 + $0x12c] sm:$0xff]
    %v98 = vld [vmem:[#allocation5 + $0x134] sm:$0xff]
    %v99 = vld [vmem:[#allocation5 + $0x13c] sm:$0xf]
    %v100 = vld [vmem:[#allocation5 + $0x140] sm:$0xff]
    %v101 = vld [vmem:[#allocation5 + $0x148] sm:$0xff]
    %v102 = vld [vmem:[#allocation5 + $0x150] sm:$0xf]
    %v103 = vld [vmem:[#allocation5 + $0x154] sm:$0xff]
    %v104 = vld [vmem:[#allocation5 + $0x15c] sm:$0xff]
    %v105 = vld [vmem:[#allocation5 + $0x164] sm:$0xf]
    %v106 = vld [vmem:[#allocation5 + $0x168] sm:$0xff]
    %v107 = vld [vmem:[#allocation5 + $0x170] sm:$0xff]
    %v108 = vld [vmem:[#allocation5 + $0x178] sm:$0xf]
    %v109 = vld [vmem:[#allocation5 + $0x17c] sm:$0xff]
    %v110 = vld [vmem:[#allocation5 + $0x184] sm:$0xff]
    %v111 = vld [vmem:[#allocation5 + $0x18c] sm:$0xf]
    %v112 = vld [vmem:[#allocation5 + $0x190] sm:$0xff]
    %v113 = vld [vmem:[#allocation5 + $0x198] sm:$0xff]
    %v114 = vld [vmem:[#allocation5 + $0x1a0] sm:$0xf]
    %v115 = vld [vmem:[#allocation5 + $0x1a4] sm:$0xff]
    %v116 = vld [vmem:[#allocation5 + $0x1ac] sm:$0xff]
    %v117 = vld [vmem:[#allocation5 + $0x1b4] sm:$0xf]
    %v118 = vld [vmem:[#allocation5 + $0x1b8] sm:$0xff]
    %v119 = vld [vmem:[#allocation5 + $0x1c0] sm:$0xff]
    %v120 = vld [vmem:[#allocation5 + $0x1c8] sm:$0xf]
    %v121 = vld [vmem:[#allocation5 + $0x1cc] sm:$0xff]
    %v122 = vld [vmem:[#allocation5 + $0x1d4] sm:$0xff]
    %v123 = vld [vmem:[#allocation5 + $0x1dc] sm:$0xf]
    %v124 = vld [vmem:[#allocation5 + $0x1e0] sm:$0xff]
    %v125 = vld [vmem:[#allocation5 + $0x1e8] sm:$0xff]
    %v126 = vld [vmem:[#allocation5 + $0x1f0] sm:$0xf]
    %v127 = vld [vmem:[#allocation5 + $0x1f4] sm:$0xff]
    %v128 = vld [vmem:[#allocation5 + $0x1fc] sm:$0xff]
    %v129 = vld [vmem:[#allocation5 + $0x204] sm:$0xf]
    %v130 = vld [vmem:[#allocation5 + $0x208] sm:$0xff]
    %v131 = vld [vmem:[#allocation5 + $0x210] sm:$0xff]
    %v132 = vld [vmem:[#allocation5 + $0x218] sm:$0xf]
    %v133 = vld [vmem:[#allocation5 + $0x21c] sm:$0xff]
    %v134 = vld [vmem:[#allocation5 + $0x224] sm:$0xff]
    %v135 = vld [vmem:[#allocation5 + $0x22c] sm:$0xf]
    %v136 = vld [vmem:[#allocation5 + $0x230] sm:$0xff]
    %v137 = vld [vmem:[#allocation5 + $0x238] sm:$0xff]
    %v138 = vld [vmem:[#allocation5 + $0x240] sm:$0xf]
    %v139 = vld [vmem:[#allocation5 + $0x244] sm:$0xff]
    %v140 = vld [vmem:[#allocation5 + $0x24c] sm:$0xff]
    %v141 = vld [vmem:[#allocation5 + $0x254] sm:$0xf]
    %v142 = vld [vmem:[#allocation5 + $0x258] sm:$0xff]
    %v143 = vld [vmem:[#allocation5 + $0x260] sm:$0xff]
    %v144 = vld [vmem:[#allocation5 + $0x268] sm:$0xf]
    %v145 = vld [vmem:[#allocation5 + $0x26c] sm:$0xff]
    %v146 = vld [vmem:[#allocation5 + $0x274] sm:$0xff]
    %v147 = vld [vmem:[#allocation5 + $0x27c] sm:$0xf]
    %v148 = vld [vmem:[#allocation5 + $0x280] sm:$0xff]
    %v149 = vld [vmem:[#allocation5 + $0x288] sm:$0xff]
    %v150 = vld [vmem:[#allocation5 + $0x290] sm:$0xf]
    %v151 = vld [vmem:[#allocation5 + $0x294] sm:$0xff]
    %v152 = vld [vmem:[#allocation5 + $0x29c] sm:$0xff]
    %v153 = vld [vmem:[#allocation5 + $0x2a4] sm:$0xf]
    %v154 = vld [vmem:[#allocation5 + $0x2a8] sm:$0xff]
    %v155 = vld [vmem:[#allocation5 + $0x2b0] sm:$0xff]
    %v156 = vld [vmem:[#allocation5 + $0x2b8] sm:$0xf]
    %v157 = vld [vmem:[#allocation5 + $0x2bc] sm:$0xff]
    %v158 = vld [vmem:[#allocation5 + $0x2c4] sm:$0xff]
    %v159 = vld [vmem:[#allocation5 + $0x2cc] sm:$0xf]
    %v160 = vld [vmem:[#allocation5 + $0x2d0] sm:$0xff]
    %v161 = vld [vmem:[#allocation5 + $0x2d8] sm:$0xff]
    %v162 = vld [vmem:[#allocation5 + $0x2e0] sm:$0xf]
    %v163 = vld [vmem:[#allocation5 + $0x2e4] sm:$0xff]
    %v164 = vld [vmem:[#allocation5 + $0x2ec] sm:$0xff]
    %v165 = vld [vmem:[#allocation5 + $0x2f4] sm:$0xf]
    %v166 = vld [vmem:[#allocation5 + $0x2f8] sm:$0xff]
    %v167 = vld [vmem:[#allocation5 + $0x300] sm:$0xff]
    %v168 = vld [vmem:[#allocation5 + $0x308] sm:$0xf]
    %v169 = vld [vmem:[#allocation5 + $0x30c] sm:$0xff]
    %v170 = vld [vmem:[#allocation5 + $0x314] sm:$0xff]
    %v171 = vld [vmem:[#allocation5 + $0x31c] sm:$0xf]
    %v172 = vld [vmem:[#allocation5 + $0x320] sm:$0xff]
    %v173 = vld [vmem:[#allocation5 + $0x328] sm:$0xff]
    %v174 = vld [vmem:[#allocation5 + $0x330] sm:$0xf]
    %v175 = vld [vmem:[#allocation5 + $0x334] sm:$0xff]
    %v176 = vld [vmem:[#allocation5 + $0x33c] sm:$0xff]
    %v177 = vld [vmem:[#allocation5 + $0x344] sm:$0xf]
    %v178 = vld [vmem:[#allocation5 + $0x348] sm:$0xff]
    %v179 = vld [vmem:[#allocation5 + $0x350] sm:$0xff]
    %v180 = vld [vmem:[#allocation5 + $0x358] sm:$0xf]
    %v181 = vld [vmem:[#allocation5 + $0x35c] sm:$0xff]
    %v182 = vld [vmem:[#allocation5 + $0x364] sm:$0xff]
    %v183 = vld [vmem:[#allocation5 + $0x36c] sm:$0xf]
    %v184 = vld [vmem:[#allocation5 + $0x370] sm:$0xff]
    %v185 = vld [vmem:[#allocation5 + $0x378] sm:$0xff]
    %v186 = vld [vmem:[#allocation5 + $0x380] sm:$0xf]
    %v187 = vld [vmem:[#allocation5 + $0x384] sm:$0xff]
    %v188 = vld [vmem:[#allocation5 + $0x38c] sm:$0xff]
    %v189 = vld [vmem:[#allocation5 + $0x394] sm:$0xf]
    %v190 = vld [vmem:[#allocation5 + $0x398] sm:$0xff]
    %v191 = vld [vmem:[#allocation5 + $0x3a0] sm:$0xff]
    %v192 = vld [vmem:[#allocation5 + $0x3a8] sm:$0xf]
    %v193 = vld [vmem:[#allocation5 + $0x3ac] sm:$0xff]
    %v194 = vld [vmem:[#allocation5 + $0x3b4] sm:$0xff]
    %v195 = vld [vmem:[#allocation5 + $0x3bc] sm:$0xf]
    %v196 = vld [vmem:[#allocation5 + $0x3c0] sm:$0xff]
    %v197 = vld [vmem:[#allocation5 + $0x3c8] sm:$0xff]
    %v198 = vld [vmem:[#allocation5 + $0x3d0] sm:$0xf]
    %v199 = vld [vmem:[#allocation5 + $0x3d4] sm:$0xff]
    %v200 = vld [vmem:[#allocation5 + $0x3dc] sm:$0xff]
    %v201 = vld [vmem:[#allocation5 + $0x3e4] sm:$0xf]
    %v202 = vld [vmem:[#allocation5 + $0x3e8] sm:$0xff]
    %v203 = vld [vmem:[#allocation5 + $0x3f0] sm:$0xff]
    %v204 = vld [vmem:[#allocation5 + $0x3f8] sm:$0xf]
    %v205 = vld [vmem:[#allocation5 + $0x3fc] sm:$0xff]
    %v206 = vld [vmem:[#allocation5 + $0x404] sm:$0xff]
    %v207 = vld [vmem:[#allocation5 + $0x40c] sm:$0xf]
    %v208 = vld [vmem:[#allocation5 + $0x410] sm:$0xff]
    %v209 = vld [vmem:[#allocation5 + $0x418] sm:$0xff]
    %v210 = vld [vmem:[#allocation5 + $0x420] sm:$0xf]
    %v211 = vld [vmem:[#allocation5 + $0x424] sm:$0xff]
    %v212 = vld [vmem:[#allocation5 + $0x42c] sm:$0xff]
    %v213 = vld [vmem:[#allocation5 + $0x434] sm:$0xf]
    %v214 = vld [vmem:[#allocation5 + $0x438] sm:$0xff]
    %v215 = vld [vmem:[#allocation5 + $0x440] sm:$0xff]
    %v216 = vld [vmem:[#allocation5 + $0x448] sm:$0xf]
    %v217 = vld [vmem:[#allocation5 + $0x44c] sm:$0xff]
    %v218 = vld [vmem:[#allocation5 + $0x454] sm:$0xff]
    %v219 = vld [vmem:[#allocation5 + $0x45c] sm:$0xf]
    %v220 = vld [vmem:[#allocation5 + $0x460] sm:$0xff]
    %v221 = vld [vmem:[#allocation5 + $0x468] sm:$0xff]
    %v222 = vld [vmem:[#allocation5 + $0x470] sm:$0xf]
    %v223 = vld [vmem:[#allocation5 + $0x474] sm:$0xff]
    %v224 = vld [vmem:[#allocation5 + $0x47c] sm:$0xff]
    %v225 = vld [vmem:[#allocation5 + $0x484] sm:$0xf]
    %v226 = vld [vmem:[#allocation5 + $0x488] sm:$0xff]
    %v227 = vld [vmem:[#allocation5 + $0x490] sm:$0xff]
    %v228 = vld [vmem:[#allocation5 + $0x498] sm:$0xf]
    %v229 = vld [vmem:[#allocation5 + $0x49c] sm:$0xff]
    %v230 = vld [vmem:[#allocation5 + $0x4a4] sm:$0xff]
    %v231 = vld [vmem:[#allocation5 + $0x4ac] sm:$0xf]
    %v232 = vld [vmem:[#allocation5 + $0x4b0] sm:$0xff]
    %v233 = vld [vmem:[#allocation5 + $0x4b8] sm:$0xff]
    %v234 = vld [vmem:[#allocation5 + $0x4c0] sm:$0xf]
    %v235 = vld [vmem:[#allocation5 + $0x4c4] sm:$0xff]
    %v236 = vld [vmem:[#allocation5 + $0x4cc] sm:$0xff]
    %v237 = vld [vmem:[#allocation5 + $0x4d4] sm:$0xf]
    %v238 = vld [vmem:[#allocation5 + $0x4d8] sm:$0xff]
    %v239 = vld [vmem:[#allocation5 + $0x4e0] sm:$0xff]
    %v240 = vld [vmem:[#allocation5 + $0x4e8] sm:$0xf]
    %v241 = vld [vmem:[#allocation5 + $0x4ec] sm:$0xff]
    %v242 = vld [vmem:[#allocation5 + $0x4f4] sm:$0xff]
    %v243 = vld [vmem:[#allocation5 + $0x4fc] sm:$0xf]
    %v244 = vld [vmem:[#allocation5 + $0x500] sm:$0xff]
    %v245 = vld [vmem:[#allocation5 + $0x508] sm:$0xff]
    %v246 = vld [vmem:[#allocation5 + $0x510] sm:$0xf]
    %v247 = vld [vmem:[#allocation5 + $0x514] sm:$0xff]
    %v248 = vld [vmem:[#allocation5 + $0x51c] sm:$0xff]
    %v249 = vld [vmem:[#allocation5 + $0x524] sm:$0xf]
    %v250 = vld [vmem:[#allocation5 + $0x528] sm:$0xff]
    %v251 = vld [vmem:[#allocation5 + $0x530] sm:$0xff]
    %v252 = vld [vmem:[#allocation5 + $0x538] sm:$0xf]
    %v253 = vld [vmem:[#allocation5 + $0x53c] sm:$0xff]
    %v254 = vld [vmem:[#allocation5 + $0x544] sm:$0xff]
    %v255 = vld [vmem:[#allocation5 + $0x54c] sm:$0xf]
    %v256 = vld [vmem:[#allocation5 + $0x550] sm:$0xff]
    %v257 = vld [vmem:[#allocation5 + $0x558] sm:$0xff]
    %v258 = vld [vmem:[#allocation5 + $0x560] sm:$0xf]
    %v259 = vld [vmem:[#allocation5 + $0x564] sm:$0xff]
    %v260 = vld [vmem:[#allocation5 + $0x56c] sm:$0xff]
    %v261 = vld [vmem:[#allocation5 + $0x574] sm:$0xf]
    %v262 = vld [vmem:[#allocation5 + $0x578] sm:$0xff]
    %v263 = vld [vmem:[#allocation5 + $0x580] sm:$0xff]
    %v264 = vld [vmem:[#allocation5 + $0x588] sm:$0xf]
    %v265 = vld [vmem:[#allocation5 + $0x58c] sm:$0xff]
    %v266 = vld [vmem:[#allocation5 + $0x594] sm:$0xff]
    %v267 = vld [vmem:[#allocation5 + $0x59c] sm:$0xf]
    %v268 = vunpack.c.l.bf16 %v52
    %v269 = vunpack.c.h.bf16 %v52
    %v270 = vunpack.c.l.bf16 %v53
    %v271 = vunpack.c.h.bf16 %v53
    %v272 = vunpack.c.l.bf16 %v54
    %v273 = vunpack.c.l.bf16 %v55
    %v274 = vunpack.c.h.bf16 %v55
    %v275 = vunpack.c.l.bf16 %v56
    %v276 = vunpack.c.h.bf16 %v56
    %v277 = vunpack.c.l.bf16 %v57
    %v278 = vunpack.c.l.bf16 %v58
    %v279 = vunpack.c.h.bf16 %v58
    %v280 = vunpack.c.l.bf16 %v59
    %v281 = vunpack.c.h.bf16 %v59
    %v282 = vunpack.c.l.bf16 %v60
    %v283 = vunpack.c.l.bf16 %v61
    %v284 = vunpack.c.h.bf16 %v61
    %v285 = vunpack.c.l.bf16 %v62
    %v286 = vunpack.c.h.bf16 %v62
    %v287 = vunpack.c.l.bf16 %v63
    %v288 = vunpack.c.l.bf16 %v64
    %v289 = vunpack.c.h.bf16 %v64
    %v290 = vunpack.c.l.bf16 %v65
    %v291 = vunpack.c.h.bf16 %v65
    %v292 = vunpack.c.l.bf16 %v66
    %v293 = vunpack.c.l.bf16 %v67
    %v294 = vunpack.c.h.bf16 %v67
    %v295 = vunpack.c.l.bf16 %v68
    %v296 = vunpack.c.h.bf16 %v68
    %v297 = vunpack.c.l.bf16 %v69
    %v298 = vunpack.c.l.bf16 %v70
    %v299 = vunpack.c.h.bf16 %v70
    %v300 = vunpack.c.l.bf16 %v71
    %v301 = vunpack.c.h.bf16 %v71
    %v302 = vunpack.c.l.bf16 %v72
    %v303 = vunpack.c.l.bf16 %v73
    %v304 = vunpack.c.h.bf16 %v73
    %v305 = vunpack.c.l.bf16 %v74
    %v306 = vunpack.c.h.bf16 %v74
    %v307 = vunpack.c.l.bf16 %v75
    %v308 = vunpack.c.l.bf16 %v76
    %v309 = vunpack.c.h.bf16 %v76
    %v310 = vunpack.c.l.bf16 %v77
    %v311 = vunpack.c.h.bf16 %v77
    %v312 = vunpack.c.l.bf16 %v78
    %v313 = vunpack.c.l.bf16 %v79
    %v314 = vunpack.c.h.bf16 %v79
    %v315 = vunpack.c.l.bf16 %v80
    %v316 = vunpack.c.h.bf16 %v80
    %v317 = vunpack.c.l.bf16 %v81
    %v318 = vunpack.c.l.bf16 %v82
    %v319 = vunpack.c.h.bf16 %v82
    %v320 = vunpack.c.l.bf16 %v83
    %v321 = vunpack.c.h.bf16 %v83
    %v322 = vunpack.c.l.bf16 %v84
    %v323 = vunpack.c.l.bf16 %v85
    %v324 = vunpack.c.h.bf16 %v85
    %v325 = vunpack.c.l.bf16 %v86
    %v326 = vunpack.c.h.bf16 %v86
    %v327 = vunpack.c.l.bf16 %v87
    %v328 = vunpack.c.l.bf16 %v88
    %v329 = vunpack.c.h.bf16 %v88
    %v330 = vunpack.c.l.bf16 %v89
    %v331 = vunpack.c.h.bf16 %v89
    %v332 = vunpack.c.l.bf16 %v90
    %v333 = vunpack.c.l.bf16 %v91
    %v334 = vunpack.c.h.bf16 %v91
    %v335 = vunpack.c.l.bf16 %v92
    %v336 = vunpack.c.h.bf16 %v92
    %v337 = vunpack.c.l.bf16 %v93
    %v338 = vunpack.c.l.bf16 %v94
    %v339 = vunpack.c.h.bf16 %v94
    %v340 = vunpack.c.l.bf16 %v95
    %v341 = vunpack.c.h.bf16 %v95
    %v342 = vunpack.c.l.bf16 %v96
    %v343 = vunpack.c.l.bf16 %v97
    %v344 = vunpack.c.h.bf16 %v97
    %v345 = vunpack.c.l.bf16 %v98
    %v346 = vunpack.c.h.bf16 %v98
    %v347 = vunpack.c.l.bf16 %v99
    %v348 = vunpack.c.l.bf16 %v100
    %v349 = vunpack.c.h.bf16 %v100
    %v350 = vunpack.c.l.bf16 %v101
    %v351 = vunpack.c.h.bf16 %v101
    %v352 = vunpack.c.l.bf16 %v102
    %v353 = vunpack.c.l.bf16 %v103
    %v354 = vunpack.c.h.bf16 %v103
    %v355 = vunpack.c.l.bf16 %v104
    %v356 = vunpack.c.h.bf16 %v104
    %v357 = vunpack.c.l.bf16 %v105
    %v358 = vunpack.c.l.bf16 %v106
    %v359 = vunpack.c.h.bf16 %v106
    %v360 = vunpack.c.l.bf16 %v107
    %v361 = vunpack.c.h.bf16 %v107
    %v362 = vunpack.c.l.bf16 %v108
    %v363 = vunpack.c.l.bf16 %v109
    %v364 = vunpack.c.h.bf16 %v109
    %v365 = vunpack.c.l.bf16 %v110
    %v366 = vunpack.c.h.bf16 %v110
    %v367 = vunpack.c.l.bf16 %v111
    %v368 = vunpack.c.l.bf16 %v112
    %v369 = vunpack.c.h.bf16 %v112
    %v370 = vunpack.c.l.bf16 %v113
    %v371 = vunpack.c.h.bf16 %v113
    %v372 = vunpack.c.l.bf16 %v114
    %v373 = vunpack.c.l.bf16 %v115
    %v374 = vunpack.c.h.bf16 %v115
    %v375 = vunpack.c.l.bf16 %v116
    %v376 = vunpack.c.h.bf16 %v116
    %v377 = vunpack.c.l.bf16 %v117
    %v378 = vunpack.c.l.bf16 %v118
    %v379 = vunpack.c.h.bf16 %v118
    %v380 = vunpack.c.l.bf16 %v119
    %v381 = vunpack.c.h.bf16 %v119
    %v382 = vunpack.c.l.bf16 %v120
    %v383 = vunpack.c.l.bf16 %v121
    %v384 = vunpack.c.h.bf16 %v121
    %v385 = vunpack.c.l.bf16 %v122
    %v386 = vunpack.c.h.bf16 %v122
    %v387 = vunpack.c.l.bf16 %v123
    %v388 = vunpack.c.l.bf16 %v124
    %v389 = vunpack.c.h.bf16 %v124
    %v390 = vunpack.c.l.bf16 %v125
    %v391 = vunpack.c.h.bf16 %v125
    %v392 = vunpack.c.l.bf16 %v126
    %v393 = vunpack.c.l.bf16 %v127
    %v394 = vunpack.c.h.bf16 %v127
    %v395 = vunpack.c.l.bf16 %v128
    %v396 = vunpack.c.h.bf16 %v128
    %v397 = vunpack.c.l.bf16 %v129
    %v398 = vunpack.c.l.bf16 %v130
    %v399 = vunpack.c.h.bf16 %v130
    %v400 = vunpack.c.l.bf16 %v131
    %v401 = vunpack.c.h.bf16 %v131
    %v402 = vunpack.c.l.bf16 %v132
    %v403 = vunpack.c.l.bf16 %v133
    %v404 = vunpack.c.h.bf16 %v133
    %v405 = vunpack.c.l.bf16 %v134
    %v406 = vunpack.c.h.bf16 %v134
    %v407 = vunpack.c.l.bf16 %v135
    %v408 = vunpack.c.l.bf16 %v136
    %v409 = vunpack.c.h.bf16 %v136
    %v410 = vunpack.c.l.bf16 %v137
    %v411 = vunpack.c.h.bf16 %v137
    %v412 = vunpack.c.l.bf16 %v138
    %v413 = vunpack.c.l.bf16 %v139
    %v414 = vunpack.c.h.bf16 %v139
    %v415 = vunpack.c.l.bf16 %v140
    %v416 = vunpack.c.h.bf16 %v140
    %v417 = vunpack.c.l.bf16 %v141
    %v418 = vunpack.c.l.bf16 %v142
    %v419 = vunpack.c.h.bf16 %v142
    %v420 = vunpack.c.l.bf16 %v143
    %v421 = vunpack.c.h.bf16 %v143
    %v422 = vunpack.c.l.bf16 %v144
    %v423 = vunpack.c.l.bf16 %v145
    %v424 = vunpack.c.h.bf16 %v145
    %v425 = vunpack.c.l.bf16 %v146
    %v426 = vunpack.c.h.bf16 %v146
    %v427 = vunpack.c.l.bf16 %v147
    %v428 = vunpack.c.l.bf16 %v148
    %v429 = vunpack.c.h.bf16 %v148
    %v430 = vunpack.c.l.bf16 %v149
    %v431 = vunpack.c.h.bf16 %v149
    %v432 = vunpack.c.l.bf16 %v150
    %v433 = vunpack.c.l.bf16 %v151
    %v434 = vunpack.c.h.bf16 %v151
    %v435 = vunpack.c.l.bf16 %v152
    %v436 = vunpack.c.h.bf16 %v152
    %v437 = vunpack.c.l.bf16 %v153
    %v438 = vunpack.c.l.bf16 %v154
    %v439 = vunpack.c.h.bf16 %v154
    %v440 = vunpack.c.l.bf16 %v155
    %v441 = vunpack.c.h.bf16 %v155
    %v442 = vunpack.c.l.bf16 %v156
    %v443 = vunpack.c.l.bf16 %v157
    %v444 = vunpack.c.h.bf16 %v157
    %v445 = vunpack.c.l.bf16 %v158
    %v446 = vunpack.c.h.bf16 %v158
    %v447 = vunpack.c.l.bf16 %v159
    %v448 = vunpack.c.l.bf16 %v160
    %v449 = vunpack.c.h.bf16 %v160
    %v450 = vunpack.c.l.bf16 %v161
    %v451 = vunpack.c.h.bf16 %v161
    %v452 = vunpack.c.l.bf16 %v162
    %v453 = vunpack.c.l.bf16 %v163
    %v454 = vunpack.c.h.bf16 %v163
    %v455 = vunpack.c.l.bf16 %v164
    %v456 = vunpack.c.h.bf16 %v164
    %v457 = vunpack.c.l.bf16 %v165
    %v458 = vunpack.c.l.bf16 %v166
    %v459 = vunpack.c.h.bf16 %v166
    %v460 = vunpack.c.l.bf16 %v167
    %v461 = vunpack.c.h.bf16 %v167
    %v462 = vunpack.c.l.bf16 %v168
    %v463 = vunpack.c.l.bf16 %v169
    %v464 = vunpack.c.h.bf16 %v169
    %v465 = vunpack.c.l.bf16 %v170
    %v466 = vunpack.c.h.bf16 %v170
    %v467 = vunpack.c.l.bf16 %v171
    %v468 = vunpack.c.l.bf16 %v172
    %v469 = vunpack.c.h.bf16 %v172
    %v470 = vunpack.c.l.bf16 %v173
    %v471 = vunpack.c.h.bf16 %v173
    %v472 = vunpack.c.l.bf16 %v174
    %v473 = vunpack.c.l.bf16 %v175
    %v474 = vunpack.c.h.bf16 %v175
    %v475 = vunpack.c.l.bf16 %v176
    %v476 = vunpack.c.h.bf16 %v176
    %v477 = vunpack.c.l.bf16 %v177
    %v478 = vunpack.c.l.bf16 %v178
    %v479 = vunpack.c.h.bf16 %v178
    %v480 = vunpack.c.l.bf16 %v179
    %v481 = vunpack.c.h.bf16 %v179
    %v482 = vunpack.c.l.bf16 %v180
    %v483 = vunpack.c.l.bf16 %v181
    %v484 = vunpack.c.h.bf16 %v181
    %v485 = vunpack.c.l.bf16 %v182
    %v486 = vunpack.c.h.bf16 %v182
    %v487 = vunpack.c.l.bf16 %v183
    %v488 = vunpack.c.l.bf16 %v184
    %v489 = vunpack.c.h.bf16 %v184
    %v490 = vunpack.c.l.bf16 %v185
    %v491 = vunpack.c.h.bf16 %v185
    %v492 = vunpack.c.l.bf16 %v186
    %v493 = vunpack.c.l.bf16 %v187
    %v494 = vunpack.c.h.bf16 %v187
    %v495 = vunpack.c.l.bf16 %v188
    %v496 = vunpack.c.h.bf16 %v188
    %v497 = vunpack.c.l.bf16 %v189
    %v498 = vunpack.c.l.bf16 %v190
    %v499 = vunpack.c.h.bf16 %v190
    %v500 = vunpack.c.l.bf16 %v191
    %v501 = vunpack.c.h.bf16 %v191
    %v502 = vunpack.c.l.bf16 %v192
    %v503 = vunpack.c.l.bf16 %v193
    %v504 = vunpack.c.h.bf16 %v193
    %v505 = vunpack.c.l.bf16 %v194
    %v506 = vunpack.c.h.bf16 %v194
    %v507 = vunpack.c.l.bf16 %v195
    %v508 = vunpack.c.l.bf16 %v196
    %v509 = vunpack.c.h.bf16 %v196
    %v510 = vunpack.c.l.bf16 %v197
    %v511 = vunpack.c.h.bf16 %v197
    %v512 = vunpack.c.l.bf16 %v198
    %v513 = vunpack.c.l.bf16 %v199
    %v514 = vunpack.c.h.bf16 %v199
    %v515 = vunpack.c.l.bf16 %v200
    %v516 = vunpack.c.h.bf16 %v200
    %v517 = vunpack.c.l.bf16 %v201
    %v518 = vunpack.c.l.bf16 %v202
    %v519 = vunpack.c.h.bf16 %v202
    %v520 = vunpack.c.l.bf16 %v203
    %v521 = vunpack.c.h.bf16 %v203
    %v522 = vunpack.c.l.bf16 %v204
    %v523 = vunpack.c.l.bf16 %v205
    %v524 = vunpack.c.h.bf16 %v205
    %v525 = vunpack.c.l.bf16 %v206
    %v526 = vunpack.c.h.bf16 %v206
    %v527 = vunpack.c.l.bf16 %v207
    %v528 = vunpack.c.l.bf16 %v208
    %v529 = vunpack.c.h.bf16 %v208
    %v530 = vunpack.c.l.bf16 %v209
    %v531 = vunpack.c.h.bf16 %v209
    %v532 = vunpack.c.l.bf16 %v210
    %v533 = vunpack.c.l.bf16 %v211
    %v534 = vunpack.c.h.bf16 %v211
    %v535 = vunpack.c.l.bf16 %v212
    %v536 = vunpack.c.h.bf16 %v212
    %v537 = vunpack.c.l.bf16 %v213
    %v538 = vunpack.c.l.bf16 %v214
    %v539 = vunpack.c.h.bf16 %v214
    %v540 = vunpack.c.l.bf16 %v215
    %v541 = vunpack.c.h.bf16 %v215
    %v542 = vunpack.c.l.bf16 %v216
    %v543 = vunpack.c.l.bf16 %v217
    %v544 = vunpack.c.h.bf16 %v217
    %v545 = vunpack.c.l.bf16 %v218
    %v546 = vunpack.c.h.bf16 %v218
    %v547 = vunpack.c.l.bf16 %v219
    %v548 = vunpack.c.l.bf16 %v220
    %v549 = vunpack.c.h.bf16 %v220
    %v550 = vunpack.c.l.bf16 %v221
    %v551 = vunpack.c.h.bf16 %v221
    %v552 = vunpack.c.l.bf16 %v222
    %v553 = vunpack.c.l.bf16 %v223
    %v554 = vunpack.c.h.bf16 %v223
    %v555 = vunpack.c.l.bf16 %v224
    %v556 = vunpack.c.h.bf16 %v224
    %v557 = vunpack.c.l.bf16 %v225
    %v558 = vunpack.c.l.bf16 %v226
    %v559 = vunpack.c.h.bf16 %v226
    %v560 = vunpack.c.l.bf16 %v227
    %v561 = vunpack.c.h.bf16 %v227
    %v562 = vunpack.c.l.bf16 %v228
    %v563 = vunpack.c.l.bf16 %v229
    %v564 = vunpack.c.h.bf16 %v229
    %v565 = vunpack.c.l.bf16 %v230
    %v566 = vunpack.c.h.bf16 %v230
    %v567 = vunpack.c.l.bf16 %v231
    %v568 = vunpack.c.l.bf16 %v232
    %v569 = vunpack.c.h.bf16 %v232
    %v570 = vunpack.c.l.bf16 %v233
    %v571 = vunpack.c.h.bf16 %v233
    %v572 = vunpack.c.l.bf16 %v234
    %v573 = vunpack.c.l.bf16 %v235
    %v574 = vunpack.c.h.bf16 %v235
    %v575 = vunpack.c.l.bf16 %v236
    %v576 = vunpack.c.h.bf16 %v236
    %v577 = vunpack.c.l.bf16 %v237
    %v578 = vunpack.c.l.bf16 %v238
    %v579 = vunpack.c.h.bf16 %v238
    %v580 = vunpack.c.l.bf16 %v239
    %v581 = vunpack.c.h.bf16 %v239
    %v582 = vunpack.c.l.bf16 %v240
    %v583 = vunpack.c.l.bf16 %v241
    %v584 = vunpack.c.h.bf16 %v241
    %v585 = vunpack.c.l.bf16 %v242
    %v586 = vunpack.c.h.bf16 %v242
    %v587 = vunpack.c.l.bf16 %v243
    %v588 = vunpack.c.l.bf16 %v244
    %v589 = vunpack.c.h.bf16 %v244
    %v590 = vunpack.c.l.bf16 %v245
    %v591 = vunpack.c.h.bf16 %v245
    %v592 = vunpack.c.l.bf16 %v246
    %v593 = vunpack.c.l.bf16 %v247
    %v594 = vunpack.c.h.bf16 %v247
    %v595 = vunpack.c.l.bf16 %v248
    %v596 = vunpack.c.h.bf16 %v248
    %v597 = vunpack.c.l.bf16 %v249
    %v598 = vunpack.c.l.bf16 %v250
    %v599 = vunpack.c.h.bf16 %v250
    %v600 = vunpack.c.l.bf16 %v251
    %v601 = vunpack.c.h.bf16 %v251
    %v602 = vunpack.c.l.bf16 %v252
    %v603 = vunpack.c.l.bf16 %v253
    %v604 = vunpack.c.h.bf16 %v253
    %v605 = vunpack.c.l.bf16 %v254
    %v606 = vunpack.c.h.bf16 %v254
    %v607 = vunpack.c.l.bf16 %v255
    %v608 = vunpack.c.l.bf16 %v256
    %v609 = vunpack.c.h.bf16 %v256
    %v610 = vunpack.c.l.bf16 %v257
    %v611 = vunpack.c.h.bf16 %v257
    %v612 = vunpack.c.l.bf16 %v258
    %v613 = vunpack.c.l.bf16 %v259
    %v614 = vunpack.c.h.bf16 %v259
    %v615 = vunpack.c.l.bf16 %v260
    %v616 = vunpack.c.h.bf16 %v260
    %v617 = vunpack.c.l.bf16 %v261
    %v618 = vunpack.c.l.bf16 %v262
    %v619 = vunpack.c.h.bf16 %v262
    %v620 = vunpack.c.l.bf16 %v263
    %v621 = vunpack.c.h.bf16 %v263
    %v622 = vunpack.c.l.bf16 %v264
    %v623 = vunpack.c.l.bf16 %v265
    %v624 = vunpack.c.h.bf16 %v265
    %v625 = vunpack.c.l.bf16 %v266
    %v626 = vunpack.c.h.bf16 %v266
    %v627 = vunpack.c.l.bf16 %v267
    %636 = vst [vmem:[#allocation1] ss:$4 sm:$0xff] %v44
    %s637 = scalar_lea.vmem [#allocation1], 1
    %638 = vst [vmem:[%s637] ss:$4 sm:$0xff] %v46
    %s639 = scalar_lea.vmem [#allocation1], 2
    %640 = vst [vmem:[%s639] ss:$4 sm:$0xff] %v48
    %s641 = scalar_lea.vmem [#allocation1], 3
    %642 = vst [vmem:[%s641] ss:$4 sm:$0xff] %v50
    %s643 = scalar_lea.vmem [#allocation1], 32
    %644 = vst [vmem:[%s643] ss:$4 sm:$0xff] %v45
    %s645 = scalar_lea.vmem [#allocation1], 33
    %646 = vst [vmem:[%s645] ss:$4 sm:$0xff] %v47
    %s647 = scalar_lea.vmem [#allocation1], 34
    %648 = vst [vmem:[%s647] ss:$4 sm:$0xff] %v49
    %s649 = scalar_lea.vmem [#allocation1], 35
    %650 = vst [vmem:[%s649] ss:$4 sm:$0xff] %v51
    %v651 = vld.sshfl [vmem:[#allocation1] sm:$0xff pattern:$0x73625140]
    %v652 = vld.sshfl [vmem:[#allocation1 + $0x8] sm:$0xff pattern:$0x73625140]
    %v653 = vld.sshfl [vmem:[#allocation1 + $0x10] sm:$0xff pattern:$0x73625140]
    %v654 = vld.sshfl [vmem:[#allocation1 + $0x18] sm:$0xff pattern:$0x73625140]
    %v655 = vld.sshfl [vmem:[#allocation1 + $0x20] sm:$0xff pattern:$0x73625140]
    %vm660 = vcmask 523264
    %v661 = vsel %vm660, %v655, 0
    %663 = vmatpush.msra.mxu0 %v343
    %664 = vmatpush.msra.mxu0 %v338
    %665 = vmatpush.msra.mxu0 %v333
    %666 = vmatpush.msra.mxu0 %v328
    %667 = vmatpush.msra.mxu0 %v323
    %668 = vmatpush.msra.mxu0 %v318
    %669 = vmatpush.msra.mxu0 %v313
    %670 = vmatpush.msra.mxu0 %v308
    %671 = vmatpush.msra.mxu0 %v303
    %672 = vmatpush.msra.mxu0 %v298
    %673 = vmatpush.msra.mxu0 %v293
    %674 = vmatpush.msra.mxu0 %v288
    %675 = vmatpush.msra.mxu0 %v283
    %676 = vmatpush.msra.mxu0 %v278
    %677 = vmatpush.msra.mxu0 %v273
    %678 = vmatpush.msra.mxu0 %v268
    %679 = vmatmul.f32.gmra.mxu0 %v651
    %v680 = vpop.f32.mrf.mxu0
    %v681 = vadd.f32 0.0, %v680
    %682 = vdwg.mxu0
    %683 = vmatpush.msra.mxu0 %v423
    %684 = vmatpush.msra.mxu0 %v418
    %685 = vmatpush.msra.mxu0 %v413
    %686 = vmatpush.msra.mxu0 %v408
    %687 = vmatpush.msra.mxu0 %v403
    %688 = vmatpush.msra.mxu0 %v398
    %689 = vmatpush.msra.mxu0 %v393
    %690 = vmatpush.msra.mxu0 %v388
    %691 = vmatpush.msra.mxu0 %v383
    %692 = vmatpush.msra.mxu0 %v378
    %693 = vmatpush.msra.mxu0 %v373
    %694 = vmatpush.msra.mxu0 %v368
    %695 = vmatpush.msra.mxu0 %v363
    %696 = vmatpush.msra.mxu0 %v358
    %697 = vmatpush.msra.mxu0 %v353
    %698 = vmatpush.msra.mxu0 %v348
    %699 = vmatmul.f32.gmra.mxu0 %v652
    %v700 = vpop.f32.mrf.mxu0
    %v701 = vadd.f32 %v681, %v700
    %702 = vdwg.mxu0
    %703 = vmatpush.msra.mxu0 %v503
    %704 = vmatpush.msra.mxu0 %v498
    %705 = vmatpush.msra.mxu0 %v493
    %706 = vmatpush.msra.mxu0 %v488
    %707 = vmatpush.msra.mxu0 %v483
    %708 = vmatpush.msra.mxu0 %v478
    %709 = vmatpush.msra.mxu0 %v473
    %710 = vmatpush.msra.mxu0 %v468
    %711 = vmatpush.msra.mxu0 %v463
    %712 = vmatpush.msra.mxu0 %v458
    %713 = vmatpush.msra.mxu0 %v453
    %714 = vmatpush.msra.mxu0 %v448
    %715 = vmatpush.msra.mxu0 %v443
    %716 = vmatpush.msra.mxu0 %v438
    %717 = vmatpush.msra.mxu0 %v433
    %718 = vmatpush.msra.mxu0 %v428
    %719 = vmatmul.f32.gmra.mxu0 %v653
    %v720 = vpop.f32.mrf.mxu0
    %v721 = vadd.f32 %v701, %v720
    %722 = vdwg.mxu0
    %723 = vmatpush.msra.mxu0 %v583
    %724 = vmatpush.msra.mxu0 %v578
    %725 = vmatpush.msra.mxu0 %v573
    %726 = vmatpush.msra.mxu0 %v568
    %727 = vmatpush.msra.mxu0 %v563
    %728 = vmatpush.msra.mxu0 %v558
    %729 = vmatpush.msra.mxu0 %v553
    %730 = vmatpush.msra.mxu0 %v548
    %731 = vmatpush.msra.mxu0 %v543
    %732 = vmatpush.msra.mxu0 %v538
    %733 = vmatpush.msra.mxu0 %v533
    %734 = vmatpush.msra.mxu0 %v528
    %735 = vmatpush.msra.mxu0 %v523
    %736 = vmatpush.msra.mxu0 %v518
    %737 = vmatpush.msra.mxu0 %v513
    %738 = vmatpush.msra.mxu0 %v508
    %739 = vmatmul.f32.gmra.mxu0 %v654
    %v740 = vpop.f32.mrf.mxu0
    %v741 = vadd.f32 %v721, %v740
    %742 = vdwg.mxu0
    %743 = vmatpush.msra.mxu0 0.0
    %744 = vmatpush.msra.mxu0 0.0
    %745 = vmatpush.msra.mxu0 0.0
    %746 = vmatpush.msra.mxu0 0.0
    %747 = vmatpush.msra.mxu0 0.0
    %748 = vmatpush.msra.mxu0 0.0
    %749 = vmatpush.msra.mxu0 0.0
    %750 = vmatpush.msra.mxu0 0.0
    %751 = vmatpush.msra.mxu0 %v623
    %752 = vmatpush.msra.mxu0 %v618
    %753 = vmatpush.msra.mxu0 %v613
    %754 = vmatpush.msra.mxu0 %v608
    %755 = vmatpush.msra.mxu0 %v603
    %756 = vmatpush.msra.mxu0 %v598
    %757 = vmatpush.msra.mxu0 %v593
    %758 = vmatpush.msra.mxu0 %v588
    %759 = vmatmul.f32.gmra.mxu0 %v661
    %v760 = vpop.f32.mrf.mxu0
    %v761 = vadd.f32 %v741, %v760
    %762 = vdwg.mxu0
    %763 = vmatpush.msra.mxu0 %v344
    %764 = vmatpush.msra.mxu0 %v339
    %765 = vmatpush.msra.mxu0 %v334
    %766 = vmatpush.msra.mxu0 %v329
    %767 = vmatpush.msra.mxu0 %v324
    %768 = vmatpush.msra.mxu0 %v319
    %769 = vmatpush.msra.mxu0 %v314
    %770 = vmatpush.msra.mxu0 %v309
    %771 = vmatpush.msra.mxu0 %v304
    %772 = vmatpush.msra.mxu0 %v299
    %773 = vmatpush.msra.mxu0 %v294
    %774 = vmatpush.msra.mxu0 %v289
    %775 = vmatpush.msra.mxu0 %v284
    %776 = vmatpush.msra.mxu0 %v279
    %777 = vmatpush.msra.mxu0 %v274
    %778 = vmatpush.msra.mxu0 %v269
    %779 = vmatmul.f32.gmra.mxu0 %v651
    %v780 = vpop.f32.mrf.mxu0
    %v781 = vadd.f32 0.0, %v780
    %782 = vdwg.mxu0
    %783 = vmatpush.msra.mxu0 %v424
    %784 = vmatpush.msra.mxu0 %v419
    %785 = vmatpush.msra.mxu0 %v414
    %786 = vmatpush.msra.mxu0 %v409
    %787 = vmatpush.msra.mxu0 %v404
    %788 = vmatpush.msra.mxu0 %v399
    %789 = vmatpush.msra.mxu0 %v394
    %790 = vmatpush.msra.mxu0 %v389
    %791 = vmatpush.msra.mxu0 %v384
    %792 = vmatpush.msra.mxu0 %v379
    %793 = vmatpush.msra.mxu0 %v374
    %794 = vmatpush.msra.mxu0 %v369
    %795 = vmatpush.msra.mxu0 %v364
    %796 = vmatpush.msra.mxu0 %v359
    %797 = vmatpush.msra.mxu0 %v354
    %798 = vmatpush.msra.mxu0 %v349
    %799 = vmatmul.f32.gmra.mxu0 %v652
    %v800 = vpop.f32.mrf.mxu0
    %v801 = vadd.f32 %v781, %v800
    %802 = vdwg.mxu0
    %803 = vmatpush.msra.mxu0 %v504
    %804 = vmatpush.msra.mxu0 %v499
    %805 = vmatpush.msra.mxu0 %v494
    %806 = vmatpush.msra.mxu0 %v489
    %807 = vmatpush.msra.mxu0 %v484
    %808 = vmatpush.msra.mxu0 %v479
    %809 = vmatpush.msra.mxu0 %v474
    %810 = vmatpush.msra.mxu0 %v469
    %811 = vmatpush.msra.mxu0 %v464
    %812 = vmatpush.msra.mxu0 %v459
    %813 = vmatpush.msra.mxu0 %v454
    %814 = vmatpush.msra.mxu0 %v449
    %815 = vmatpush.msra.mxu0 %v444
    %816 = vmatpush.msra.mxu0 %v439
    %817 = vmatpush.msra.mxu0 %v434
    %818 = vmatpush.msra.mxu0 %v429
    %819 = vmatmul.f32.gmra.mxu0 %v653
    %v820 = vpop.f32.mrf.mxu0
    %v821 = vadd.f32 %v801, %v820
    %822 = vdwg.mxu0
    %823 = vmatpush.msra.mxu0 %v584
    %824 = vmatpush.msra.mxu0 %v579
    %825 = vmatpush.msra.mxu0 %v574
    %826 = vmatpush.msra.mxu0 %v569
    %827 = vmatpush.msra.mxu0 %v564
    %828 = vmatpush.msra.mxu0 %v559
    %829 = vmatpush.msra.mxu0 %v554
    %830 = vmatpush.msra.mxu0 %v549
    %831 = vmatpush.msra.mxu0 %v544
    %832 = vmatpush.msra.mxu0 %v539
    %833 = vmatpush.msra.mxu0 %v534
    %834 = vmatpush.msra.mxu0 %v529
    %835 = vmatpush.msra.mxu0 %v524
    %836 = vmatpush.msra.mxu0 %v519
    %837 = vmatpush.msra.mxu0 %v514
    %838 = vmatpush.msra.mxu0 %v509
    %839 = vmatmul.f32.gmra.mxu0 %v654
    %v840 = vpop.f32.mrf.mxu0
    %v841 = vadd.f32 %v821, %v840
    %842 = vdwg.mxu0
    %843 = vmatpush.msra.mxu0 0.0
    %844 = vmatpush.msra.mxu0 0.0
    %845 = vmatpush.msra.mxu0 0.0
    %846 = vmatpush.msra.mxu0 0.0
    %847 = vmatpush.msra.mxu0 0.0
    %848 = vmatpush.msra.mxu0 0.0
    %849 = vmatpush.msra.mxu0 0.0
    %850 = vmatpush.msra.mxu0 0.0
    %851 = vmatpush.msra.mxu0 %v624
    %852 = vmatpush.msra.mxu0 %v619
    %853 = vmatpush.msra.mxu0 %v614
    %854 = vmatpush.msra.mxu0 %v609
    %855 = vmatpush.msra.mxu0 %v604
    %856 = vmatpush.msra.mxu0 %v599
    %857 = vmatpush.msra.mxu0 %v594
    %858 = vmatpush.msra.mxu0 %v589
    %859 = vmatmul.f32.gmra.mxu0 %v661
    %v860 = vpop.f32.mrf.mxu0
    %v861 = vadd.f32 %v841, %v860
    %862 = vdwg.mxu0
    %863 = vmatpush.msra.mxu0 %v345
    %864 = vmatpush.msra.mxu0 %v340
    %865 = vmatpush.msra.mxu0 %v335
    %866 = vmatpush.msra.mxu0 %v330
    %867 = vmatpush.msra.mxu0 %v325
    %868 = vmatpush.msra.mxu0 %v320
    %869 = vmatpush.msra.mxu0 %v315
    %870 = vmatpush.msra.mxu0 %v310
    %871 = vmatpush.msra.mxu0 %v305
    %872 = vmatpush.msra.mxu0 %v300
    %873 = vmatpush.msra.mxu0 %v295
    %874 = vmatpush.msra.mxu0 %v290
    %875 = vmatpush.msra.mxu0 %v285
    %876 = vmatpush.msra.mxu0 %v280
    %877 = vmatpush.msra.mxu0 %v275
    %878 = vmatpush.msra.mxu0 %v270
    %879 = vmatmul.f32.gmra.mxu0 %v651
    %v880 = vpop.f32.mrf.mxu0
    %v881 = vadd.f32 0.0, %v880
    %882 = vdwg.mxu0
    %883 = vmatpush.msra.mxu0 %v425
    %884 = vmatpush.msra.mxu0 %v420
    %885 = vmatpush.msra.mxu0 %v415
    %886 = vmatpush.msra.mxu0 %v410
    %887 = vmatpush.msra.mxu0 %v405
    %888 = vmatpush.msra.mxu0 %v400
    %889 = vmatpush.msra.mxu0 %v395
    %890 = vmatpush.msra.mxu0 %v390
    %891 = vmatpush.msra.mxu0 %v385
    %892 = vmatpush.msra.mxu0 %v380
    %893 = vmatpush.msra.mxu0 %v375
    %894 = vmatpush.msra.mxu0 %v370
    %895 = vmatpush.msra.mxu0 %v365
    %896 = vmatpush.msra.mxu0 %v360
    %897 = vmatpush.msra.mxu0 %v355
    %898 = vmatpush.msra.mxu0 %v350
    %899 = vmatmul.f32.gmra.mxu0 %v652
    %v900 = vpop.f32.mrf.mxu0
    %v901 = vadd.f32 %v881, %v900
    %902 = vdwg.mxu0
    %903 = vmatpush.msra.mxu0 %v505
    %904 = vmatpush.msra.mxu0 %v500
    %905 = vmatpush.msra.mxu0 %v495
    %906 = vmatpush.msra.mxu0 %v490
    %907 = vmatpush.msra.mxu0 %v485
    %908 = vmatpush.msra.mxu0 %v480
    %909 = vmatpush.msra.mxu0 %v475
    %910 = vmatpush.msra.mxu0 %v470
    %911 = vmatpush.msra.mxu0 %v465
    %912 = vmatpush.msra.mxu0 %v460
    %913 = vmatpush.msra.mxu0 %v455
    %914 = vmatpush.msra.mxu0 %v450
    %915 = vmatpush.msra.mxu0 %v445
    %916 = vmatpush.msra.mxu0 %v440
    %917 = vmatpush.msra.mxu0 %v435
    %918 = vmatpush.msra.mxu0 %v430
    %919 = vmatmul.f32.gmra.mxu0 %v653
    %v920 = vpop.f32.mrf.mxu0
    %v921 = vadd.f32 %v901, %v920
    %922 = vdwg.mxu0
    %923 = vmatpush.msra.mxu0 %v585
    %924 = vmatpush.msra.mxu0 %v580
    %925 = vmatpush.msra.mxu0 %v575
    %926 = vmatpush.msra.mxu0 %v570
    %927 = vmatpush.msra.mxu0 %v565
    %928 = vmatpush.msra.mxu0 %v560
    %929 = vmatpush.msra.mxu0 %v555
    %930 = vmatpush.msra.mxu0 %v550
    %931 = vmatpush.msra.mxu0 %v545
    %932 = vmatpush.msra.mxu0 %v540
    %933 = vmatpush.msra.mxu0 %v535
    %934 = vmatpush.msra.mxu0 %v530
    %935 = vmatpush.msra.mxu0 %v525
    %936 = vmatpush.msra.mxu0 %v520
    %937 = vmatpush.msra.mxu0 %v515
    %938 = vmatpush.msra.mxu0 %v510
    %939 = vmatmul.f32.gmra.mxu0 %v654
    %v940 = vpop.f32.mrf.mxu0
    %v941 = vadd.f32 %v921, %v940
    %942 = vdwg.mxu0
    %943 = vmatpush.msra.mxu0 0.0
    %944 = vmatpush.msra.mxu0 0.0
    %945 = vmatpush.msra.mxu0 0.0
    %946 = vmatpush.msra.mxu0 0.0
    %947 = vmatpush.msra.mxu0 0.0
    %948 = vmatpush.msra.mxu0 0.0
    %949 = vmatpush.msra.mxu0 0.0
    %950 = vmatpush.msra.mxu0 0.0
    %951 = vmatpush.msra.mxu0 %v625
    %952 = vmatpush.msra.mxu0 %v620
    %953 = vmatpush.msra.mxu0 %v615
    %954 = vmatpush.msra.mxu0 %v610
    %955 = vmatpush.msra.mxu0 %v605
    %956 = vmatpush.msra.mxu0 %v600
    %957 = vmatpush.msra.mxu0 %v595
    %958 = vmatpush.msra.mxu0 %v590
    %959 = vmatmul.f32.gmra.mxu0 %v661
    %v960 = vpop.f32.mrf.mxu0
    %v961 = vadd.f32 %v941, %v960
    %962 = vdwg.mxu0
    %963 = vmatpush.msra.mxu0 %v346
    %964 = vmatpush.msra.mxu0 %v341
    %965 = vmatpush.msra.mxu0 %v336
    %966 = vmatpush.msra.mxu0 %v331
    %967 = vmatpush.msra.mxu0 %v326
    %968 = vmatpush.msra.mxu0 %v321
    %969 = vmatpush.msra.mxu0 %v316
    %970 = vmatpush.msra.mxu0 %v311
    %971 = vmatpush.msra.mxu0 %v306
    %972 = vmatpush.msra.mxu0 %v301
    %973 = vmatpush.msra.mxu0 %v296
    %974 = vmatpush.msra.mxu0 %v291
    %975 = vmatpush.msra.mxu0 %v286
    %976 = vmatpush.msra.mxu0 %v281
    %977 = vmatpush.msra.mxu0 %v276
    %978 = vmatpush.msra.mxu0 %v271
    %979 = vmatmul.f32.gmra.mxu0 %v651
    %v980 = vpop.f32.mrf.mxu0
    %v981 = vadd.f32 0.0, %v980
    %982 = vdwg.mxu0
    %983 = vmatpush.msra.mxu0 %v426
    %984 = vmatpush.msra.mxu0 %v421
    %985 = vmatpush.msra.mxu0 %v416
    %986 = vmatpush.msra.mxu0 %v411
    %987 = vmatpush.msra.mxu0 %v406
    %988 = vmatpush.msra.mxu0 %v401
    %989 = vmatpush.msra.mxu0 %v396
    %990 = vmatpush.msra.mxu0 %v391
    %991 = vmatpush.msra.mxu0 %v386
    %992 = vmatpush.msra.mxu0 %v381
    %993 = vmatpush.msra.mxu0 %v376
    %994 = vmatpush.msra.mxu0 %v371
    %995 = vmatpush.msra.mxu0 %v366
    %996 = vmatpush.msra.mxu0 %v361
    %997 = vmatpush.msra.mxu0 %v356
    %998 = vmatpush.msra.mxu0 %v351
    %999 = vmatmul.f32.gmra.mxu0 %v652
    %v1000 = vpop.f32.mrf.mxu0
    %v1001 = vadd.f32 %v981, %v1000
    %1002 = vdwg.mxu0
    %1003 = vmatpush.msra.mxu0 %v506
    %1004 = vmatpush.msra.mxu0 %v501
    %1005 = vmatpush.msra.mxu0 %v496
    %1006 = vmatpush.msra.mxu0 %v491
    %1007 = vmatpush.msra.mxu0 %v486
    %1008 = vmatpush.msra.mxu0 %v481
    %1009 = vmatpush.msra.mxu0 %v476
    %1010 = vmatpush.msra.mxu0 %v471
    %1011 = vmatpush.msra.mxu0 %v466
    %1012 = vmatpush.msra.mxu0 %v461
    %1013 = vmatpush.msra.mxu0 %v456
    %1014 = vmatpush.msra.mxu0 %v451
    %1015 = vmatpush.msra.mxu0 %v446
    %1016 = vmatpush.msra.mxu0 %v441
    %1017 = vmatpush.msra.mxu0 %v436
    %1018 = vmatpush.msra.mxu0 %v431
    %1019 = vmatmul.f32.gmra.mxu0 %v653
    %v1020 = vpop.f32.mrf.mxu0
    %v1021 = vadd.f32 %v1001, %v1020
    %1022 = vdwg.mxu0
    %1023 = vmatpush.msra.mxu0 %v586
    %1024 = vmatpush.msra.mxu0 %v581
    %1025 = vmatpush.msra.mxu0 %v576
    %1026 = vmatpush.msra.mxu0 %v571
    %1027 = vmatpush.msra.mxu0 %v566
    %1028 = vmatpush.msra.mxu0 %v561
    %1029 = vmatpush.msra.mxu0 %v556
    %1030 = vmatpush.msra.mxu0 %v551
    %1031 = vmatpush.msra.mxu0 %v546
    %1032 = vmatpush.msra.mxu0 %v541
    %1033 = vmatpush.msra.mxu0 %v536
    %1034 = vmatpush.msra.mxu0 %v531
    %1035 = vmatpush.msra.mxu0 %v526
    %1036 = vmatpush.msra.mxu0 %v521
    %1037 = vmatpush.msra.mxu0 %v516
    %1038 = vmatpush.msra.mxu0 %v511
    %1039 = vmatmul.f32.gmra.mxu0 %v654
    %v1040 = vpop.f32.mrf.mxu0
    %v1041 = vadd.f32 %v1021, %v1040
    %1042 = vdwg.mxu0
    %1043 = vmatpush.msra.mxu0 0.0
    %1044 = vmatpush.msra.mxu0 0.0
    %1045 = vmatpush.msra.mxu0 0.0
    %1046 = vmatpush.msra.mxu0 0.0
    %1047 = vmatpush.msra.mxu0 0.0
    %1048 = vmatpush.msra.mxu0 0.0
    %1049 = vmatpush.msra.mxu0 0.0
    %1050 = vmatpush.msra.mxu0 0.0
    %1051 = vmatpush.msra.mxu0 %v626
    %1052 = vmatpush.msra.mxu0 %v621
    %1053 = vmatpush.msra.mxu0 %v616
    %1054 = vmatpush.msra.mxu0 %v611
    %1055 = vmatpush.msra.mxu0 %v606
    %1056 = vmatpush.msra.mxu0 %v601
    %1057 = vmatpush.msra.mxu0 %v596
    %1058 = vmatpush.msra.mxu0 %v591
    %1059 = vmatmul.f32.gmra.mxu0 %v661
    %v1060 = vpop.f32.mrf.mxu0
    %v1061 = vadd.f32 %v1041, %v1060
    %1062 = vdwg.mxu0
    %1063 = vmatpush.msra.mxu0 %v347
    %1064 = vmatpush.msra.mxu0 %v342
    %1065 = vmatpush.msra.mxu0 %v337
    %1066 = vmatpush.msra.mxu0 %v332
    %1067 = vmatpush.msra.mxu0 %v327
    %1068 = vmatpush.msra.mxu0 %v322
    %1069 = vmatpush.msra.mxu0 %v317
    %1070 = vmatpush.msra.mxu0 %v312
    %1071 = vmatpush.msra.mxu0 %v307
    %1072 = vmatpush.msra.mxu0 %v302
    %1073 = vmatpush.msra.mxu0 %v297
    %1074 = vmatpush.msra.mxu0 %v292
    %1075 = vmatpush.msra.mxu0 %v287
    %1076 = vmatpush.msra.mxu0 %v282
    %1077 = vmatpush.msra.mxu0 %v277
    %1078 = vmatpush.msra.mxu0 %v272
    %1079 = vmatmul.f32.gmra.mxu0 %v651
    %v1080 = vpop.f32.mrf.mxu0
    %v1081 = vadd.f32 0.0, %v1080
    %1082 = vdwg.mxu0
    %1083 = vmatpush.msra.mxu0 %v427
    %1084 = vmatpush.msra.mxu0 %v422
    %1085 = vmatpush.msra.mxu0 %v417
    %1086 = vmatpush.msra.mxu0 %v412
    %1087 = vmatpush.msra.mxu0 %v407
    %1088 = vmatpush.msra.mxu0 %v402
    %1089 = vmatpush.msra.mxu0 %v397
    %1090 = vmatpush.msra.mxu0 %v392
    %1091 = vmatpush.msra.mxu0 %v387
    %1092 = vmatpush.msra.mxu0 %v382
    %1093 = vmatpush.msra.mxu0 %v377
    %1094 = vmatpush.msra.mxu0 %v372
    %1095 = vmatpush.msra.mxu0 %v367
    %1096 = vmatpush.msra.mxu0 %v362
    %1097 = vmatpush.msra.mxu0 %v357
    %1098 = vmatpush.msra.mxu0 %v352
    %1099 = vmatmul.f32.gmra.mxu0 %v652
    %v1100 = vpop.f32.mrf.mxu0
    %v1101 = vadd.f32 %v1081, %v1100
    %1102 = vdwg.mxu0
    %1103 = vmatpush.msra.mxu0 %v507
    %1104 = vmatpush.msra.mxu0 %v502
    %1105 = vmatpush.msra.mxu0 %v497
    %1106 = vmatpush.msra.mxu0 %v492
    %1107 = vmatpush.msra.mxu0 %v487
    %1108 = vmatpush.msra.mxu0 %v482
    %1109 = vmatpush.msra.mxu0 %v477
    %1110 = vmatpush.msra.mxu0 %v472
    %1111 = vmatpush.msra.mxu0 %v467
    %1112 = vmatpush.msra.mxu0 %v462
    %1113 = vmatpush.msra.mxu0 %v457
    %1114 = vmatpush.msra.mxu0 %v452
    %1115 = vmatpush.msra.mxu0 %v447
    %1116 = vmatpush.msra.mxu0 %v442
    %1117 = vmatpush.msra.mxu0 %v437
    %1118 = vmatpush.msra.mxu0 %v432
    %1119 = vmatmul.f32.gmra.mxu0 %v653
    %v1120 = vpop.f32.mrf.mxu0
    %v1121 = vadd.f32 %v1101, %v1120
    %1122 = vdwg.mxu0
    %1123 = vmatpush.msra.mxu0 %v587
    %1124 = vmatpush.msra.mxu0 %v582
    %1125 = vmatpush.msra.mxu0 %v577
    %1126 = vmatpush.msra.mxu0 %v572
    %1127 = vmatpush.msra.mxu0 %v567
    %1128 = vmatpush.msra.mxu0 %v562
    %1129 = vmatpush.msra.mxu0 %v557
    %1130 = vmatpush.msra.mxu0 %v552
    %1131 = vmatpush.msra.mxu0 %v547
    %1132 = vmatpush.msra.mxu0 %v542
    %1133 = vmatpush.msra.mxu0 %v537
    %1134 = vmatpush.msra.mxu0 %v532
    %1135 = vmatpush.msra.mxu0 %v527
    %1136 = vmatpush.msra.mxu0 %v522
    %1137 = vmatpush.msra.mxu0 %v517
    %1138 = vmatpush.msra.mxu0 %v512
    %1139 = vmatmul.f32.gmra.mxu0 %v654
    %v1140 = vpop.f32.mrf.mxu0
    %v1141 = vadd.f32 %v1121, %v1140
    %1142 = vdwg.mxu0
    %1143 = vmatpush.msra.mxu0 0.0
    %1144 = vmatpush.msra.mxu0 0.0
    %1145 = vmatpush.msra.mxu0 0.0
    %1146 = vmatpush.msra.mxu0 0.0
    %1147 = vmatpush.msra.mxu0 0.0
    %1148 = vmatpush.msra.mxu0 0.0
    %1149 = vmatpush.msra.mxu0 0.0
    %1150 = vmatpush.msra.mxu0 0.0
    %1151 = vmatpush.msra.mxu0 %v627
    %1152 = vmatpush.msra.mxu0 %v622
    %1153 = vmatpush.msra.mxu0 %v617
    %1154 = vmatpush.msra.mxu0 %v612
    %1155 = vmatpush.msra.mxu0 %v607
    %1156 = vmatpush.msra.mxu0 %v602
    %1157 = vmatpush.msra.mxu0 %v597
    %1158 = vmatpush.msra.mxu0 %v592
    %1159 = vmatmul.f32.gmra.mxu0 %v661
    %v1160 = vpop.f32.mrf.mxu0
    %v1161 = vadd.f32 %v1141, %v1160
    %1162 = vdwg.mxu0
    %v1168 = vrot.slane %v861, 6
    %v1169 = vrot.slane %v961, 4
    %v1170 = vrot.slane %v1061, 2
    %vm1171 = vcmask 1041408
    %v1172 = vsel %vm1171, %v761, %v1168
    %vm1173 = vcmask 1045508
    %v1174 = vsel %vm1173, %v1169, %v1170
    %vm1175 = vcmask 1043456
    %v1176 = vsel %vm1175, %v1172, %v1174
    %vm1177 = vcmask 1043458
    %v1178 = vsel %vm1177, %v761, %v1168
    %vm1179 = vcmask 1045504
    %v1180 = vsel %vm1179, %v1170, %v1169
    %vm1181 = vcmask 1045506
    %v1182 = vsel %vm1181, %v1178, %v1180
    %v1183 = vrot.slane %v1182, 2
    %v1184 = vrot.slane %v1161, 2
    %v1185 = vsel %vm1173, %v761, %v1168
    %v1186 = vsel %vm1171, %v1169, %v1170
    %v1187 = vsel %vm1175, %v1186, %v1185
    %v1188 = vrot.slane %v1187, 4
    %v1189 = vrot.slane %v1161, 4
    %v1190 = vsel %vm1179, %v1168, %v761
    %v1191 = vsel %vm1177, %v1169, %v1170
    %v1192 = vsel %vm1181, %v1191, %v1190
    %v1193 = vrot.slane %v1192, 6
    %v1194 = vrot.slane %v1161, 6
    %1202 = vst [vmem:[#allocation7] sm:$0xff] %v1176
    %vm1203 = vcmask 517120
    %1204 = vst.msk [vmem:[#allocation7 + $0x8] sm:$0x3] %vm1203, %v1161
    %1205 = vst [vmem:[#allocation7 + $0xa] sm:$0xff] %v1183
    %1206 = vst.msk [vmem:[#allocation7 + $0x12] sm:$0x3] %vm1203, %v1184
    %1207 = vst [vmem:[#allocation7 + $0x14] sm:$0xff] %v1188
    %1208 = vst.msk [vmem:[#allocation7 + $0x1c] sm:$0x3] %vm1203, %v1189
    %1209 = vst [vmem:[#allocation7 + $0x1e] sm:$0xff] %v1193
    %1210 = vst.msk [vmem:[#allocation7 + $0x26] sm:$0x3] %vm1203, %v1194
    // Predicated region
    $region18: #{tpu_custom_call.1} parent=1 // pred_check
      _
    $region19: #{tpu_custom_call.1} parent=1 // pred_check_branch
      %1212 = sbr.rel (0) target = $region21
    $region20: #{tpu_custom_call.1} parent=1 // pred_region
      %1214 = vsyncadd [#allocation4], 480
      %s1215 = sshll.u32 [#allocation7], 4
      %s1216 = int_to_ptr.vmem [resolvable:$true] %s1215
      %s1217 = sshll.u32 %s2, 4
      %s1218 = int_to_ptr.hbm [resolvable:$true] %s1217
      %1223 = dma.vmem_to_hbm [thread:$0]  %s1216, 160, %s1218, [#allocation4], 160, 160, 10
    $region21: #{tpu_custom_call.1} parent=1 // pred_fallthru
      _
    // Predicated region
    $region22: #{tpu_custom_call.1} parent=1 // pred_check
      _
    $region23: #{tpu_custom_call.1} parent=1 // pred_check_branch
      %1225 = sbr.rel (0) target = $region25
    $region24: #{tpu_custom_call.1} parent=1 // pred_region
      %1227 = dma.done [#allocation4], 640
    $region25: #{tpu_custom_call.1} parent=1 // pred_fallthru
      _
    %1228 = vsyncpa [#allocation3], 1
    %1229 = vsyncpa [#allocation6], 1
    %1230 = vsyncpa [#allocation4], 1

</llo_original>
